<compile_context>
chip_gen: v6e
topology: v6e:2x2x1
jax: 0.10.0
libtpu: 0.0.40
codegen_flags: <defaults>
</compile_context>

<pallas_src>
import jax
import jax.numpy as jnp
from jax.experimental import pallas as pl
from jax.experimental.pallas import tpu as pltpu


def _round_up(n, m):
    return ((n + m - 1) // m) * m


def _num_tensorcores():
    """2 TensorCores per chip on v7x, 1 on v5e/v6e."""
    try:
        kind = jax.devices()[0].device_kind.lower()
    except Exception:
        return 1
    return 2 if "v7" in kind else 1


def _pick_block_b(batch, n_cores):
    """Padding-aware batch tile.

    * batch <= 1024: one tile of exactly round_up(batch, 8) rows (no waste).
    * batch  > 1024: pick the candidate tile minimizing padded rows.
    * v7x (n_cores > 1) and batch > 512: cap the tile at ~batch/2 so the
      parallel grid axis gives every TensorCore at least one tile.
    """
    b8 = _round_up(batch, 8)
    max_tile = 1024
    if n_cores > 1 and batch > 512:
        max_tile = min(max_tile, _round_up(-(-b8 // n_cores), 8))
    if b8 <= max_tile:
        return b8
    best, best_waste = None, None
    for t in sorted({1024, 512, 384, 256, 128, max_tile}, reverse=True):
        if t > max_tile:
            continue
        waste = _round_up(b8, t) - batch
        if best_waste is None or waste < best_waste:
            best, best_waste = t, waste
    return best


def _dqn_kernel(x_ref, w1_ref, b1_ref, w2_ref, b2_ref, w3_ref, b3_ref, o_ref):
    out_dim = o_ref.shape[1]

    # Accept bf16 x directly; only cast if the caller passed f32.
    x = x_ref[...]
    if x.dtype != jnp.bfloat16:
        x = x.astype(jnp.bfloat16)

    # bf16 operands, f32 MXU accumulation; bias add / relu in f32.
    h1 = jnp.dot(x, w1_ref[...], preferred_element_type=jnp.float32)
    h1 = jnp.maximum(h1 + b1_ref[...], 0.0)

    h2 = jnp.dot(h1.astype(jnp.bfloat16), w2_ref[...],
                 preferred_element_type=jnp.float32)
    h2 = jnp.maximum(h2 + b2_ref[...], 0.0)

    # Head matmul runs at the pre-padded 128-lane width (robust lowering,
    # negligible extra compute); only the real out_dim lanes are stored.
    h3 = jnp.dot(h2.astype(jnp.bfloat16), w3_ref[...],
                 preferred_element_type=jnp.float32)
    o_ref[...] = (h3[:, :out_dim] + b3_ref[...]).astype(o_ref.dtype)


def prepare_params(w1, b1, w2, b2, w3, b3):
    """One-time parameter preprocessing (call ONCE, not per forward):
    cast weights to bf16 and zero-pad the narrow head weight to a full
    128-lane matmul width. Biases stay f32 (added post-accumulation)."""
    head_pad = _round_up(w3.shape[1], 128)
    w3p = jnp.pad(w3, ((0, 0), (0, head_pad - w3.shape[1])))
    return (w1.astype(jnp.bfloat16), b1,
            w2.astype(jnp.bfloat16), b2,
            w3p.astype(jnp.bfloat16), b3)


@jax.jit
def dqn_forward(x, w1, b1, w2, b2, w3_padded, b3):
    """x: (batch, in_dim) f32 or bf16. Weights from prepare_params()."""
    batch, in_dim = x.shape
    out_dim = b3.shape[1]

    block_b = _pick_block_b(batch, _num_tensorcores())
    padded_b = _round_up(batch, block_b)
    x_p = x if padded_b == batch else jnp.pad(x, ((0, padded_b - batch), (0, 0)))

    grid = (padded_b // block_b,)

    # Replicated (weight/bias) spec: constant index_map -> fetched once,
    # resident in VMEM across all batch tiles.
    def rep(a):
        nd = a.ndim
        return pl.BlockSpec(a.shape, lambda i, _nd=nd: (0,) * _nd)

    out = pl.pallas_call(
        _dqn_kernel,
        out_shape=jax.ShapeDtypeStruct((padded_b, out_dim), jnp.float32),
        grid=grid,
        in_specs=[
            pl.BlockSpec((block_b, in_dim), lambda i: (i, 0)),   # x: tiled rows
            rep(w1), rep(b1),
            rep(w2), rep(b2),
            rep(w3_padded), rep(b3),
        ],
        out_specs=pl.BlockSpec((block_b, out_dim), lambda i: (i, 0)),
        compiler_params=pltpu.CompilerParams(
            dimension_semantics=("parallel",)),   # shards batch tiles across v7x's 2 TCs
    )(x_p, w1, b1, w2, b2, w3_padded, b3)

    if padded_b != batch:
        out = out[:batch]
    return out


def init_dqn_params(key, input_dim, output_dim, hidden=128):
    """Deterministic init mimicking PyTorch nn.Linear default (uniform +/- 1/sqrt(fan_in))."""
    keys = jax.random.split(key, 6)

    def linear(kw, kb, fan_in, fan_out):
        bound = 1.0 / jnp.sqrt(jnp.float32(fan_in))
        # stored as (in, out) so the kernel computes x @ W
        w = jax.random.uniform(kw, (fan_in, fan_out), jnp.float32, -bound, bound)
        b = jax.random.uniform(kb, (1, fan_out), jnp.float32, -bound, bound)
        return w, b

    w1, b1 = linear(keys[0], keys[1], input_dim, hidden)
    w2, b2 = linear(keys[2], keys[3], hidden, hidden)
    w3, b3 = linear(keys[4], keys[5], hidden, output_dim)
    return w1, b1, w2, b2, w3, b3


def dqn_reference(x, w1, b1, w2, b2, w3, b3):
    h1 = jnp.maximum(x @ w1 + b1, 0.0)
    h2 = jnp.maximum(h1 @ w2 + b2, 0.0)
    return h2 @ w3 + b3


if __name__ == "__main__":
    key = jax.random.PRNGKey(0)
    k_params, k_x1, k_x2, k_x3 = jax.random.split(key, 4)

    input_dim, output_dim = 16, 4
    raw_params = init_dqn_params(k_params, input_dim, output_dim)
    params = prepare_params(*raw_params)          # one-time preprocessing
    jax.block_until_ready(params)

    # bf16 operands with f32 accumulation -> loosened tolerance vs. f32 reference.
    tol = dict(atol=5e-2, rtol=5e-2)

    # Deployment-sized batch (single tile, grid=1, no padded rows beyond 8).
    x_small = jax.random.normal(k_x1, (8, input_dim), jnp.float32)
    out_small = dqn_forward(x_small, *params)
    jax.block_until_ready(out_small)
    assert out_small.shape == (8, output_dim)
    assert jnp.allclose(out_small, dqn_reference(x_small, *raw_params), **tol)

    # Mid batch: block_b == round_up(batch, 8) -> single tile, zero waste.
    x_mid = jax.random.normal(k_x2, (384, input_dim), jnp.float32)
    out_mid = dqn_forward(x_mid, *params)
    jax.block_until_ready(out_mid)
    assert out_mid.shape == (384, output_dim)
    assert jnp.allclose(out_mid, dqn_reference(x_mid, *raw_params), **tol)

    # Large, non-tile-aligned batch: multi-tile grid + row-padding path.
    x_big = jax.random.normal(k_x3, (1200, input_dim), jnp.float32)
    out_big = dqn_forward(x_big, *params)
    jax.block_until_ready(out_big)
    assert out_big.shape == (1200, output_dim)
    assert jnp.allclose(out_big, dqn_reference(x_big, *raw_params), **tol)

    print("KERNEL_OK")
</pallas_src>

<mosaic_0001>
module attributes {stable_mosaic.version = 11 : i64} {
  func.func @_dqn_kernel(%arg0: i32, %arg1: memref<8x16xf32, #tpu.memory_space<vmem>>, %arg2: memref<16x128xbf16, #tpu.memory_space<vmem>>, %arg3: memref<1x128xf32, #tpu.memory_space<vmem>>, %arg4: memref<128x128xbf16, #tpu.memory_space<vmem>>, %arg5: memref<1x128xf32, #tpu.memory_space<vmem>>, %arg6: memref<128x128xbf16, #tpu.memory_space<vmem>>, %arg7: memref<1x4xf32, #tpu.memory_space<vmem>>, %arg8: memref<8x4xf32, #tpu.memory_space<vmem>>) attributes {dimension_semantics = [#tpu.dimension_semantics<parallel>], iteration_bounds = array<i64: 1>, scalar_prefetch = 0 : i64, scratch_operands = 0 : i64, tpu.core_type = #tpu.core_type<tc>, window_params = [{transform_indices = @transform_0, window_bounds = array<i64: 8, 16>}, {pipeline_mode = #tpu.pipeline_mode<synchronous>, transform_indices = @transform_1, window_bounds = array<i64: 16, 128>}, {pipeline_mode = #tpu.pipeline_mode<synchronous>, transform_indices = @transform_2, window_bounds = array<i64: 1, 128>}, {pipeline_mode = #tpu.pipeline_mode<synchronous>, transform_indices = @transform_3, window_bounds = array<i64: 128, 128>}, {pipeline_mode = #tpu.pipeline_mode<synchronous>, transform_indices = @transform_4, window_bounds = array<i64: 1, 128>}, {pipeline_mode = #tpu.pipeline_mode<synchronous>, transform_indices = @transform_5, window_bounds = array<i64: 128, 128>}, {pipeline_mode = #tpu.pipeline_mode<synchronous>, transform_indices = @transform_6, window_bounds = array<i64: 1, 4>}, {transform_indices = @transform_7, window_bounds = array<i64: 8, 4>}]} {
    %c0 = arith.constant 0 : index
    %c0_0 = arith.constant 0 : index
    %0 = vector.load %arg1[%c0, %c0_0] : memref<8x16xf32, #tpu.memory_space<vmem>>, vector<8x16xf32>
    %1 = arith.truncf %0 : vector<8x16xf32> to vector<8x16xbf16>
    %c0_1 = arith.constant 0 : index
    %c0_2 = arith.constant 0 : index
    %2 = vector.load %arg2[%c0_1, %c0_2] : memref<16x128xbf16, #tpu.memory_space<vmem>>, vector<16x128xbf16>
    %cst = arith.constant dense<0.000000e+00> : vector<8x128xf32>
    %3 = tpu.matmul %1, %2, %cst {dimension_numbers = #tpu.dot_dimension_numbers<[1], [0], [0], [1], [0, 0, 1, 1], [], []>} : vector<8x16xbf16>, vector<16x128xbf16>, vector<8x128xf32> -> vector<8x128xf32>
    %c0_3 = arith.constant 0 : index
    %c0_4 = arith.constant 0 : index
    %4 = vector.load %arg3[%c0_3, %c0_4] : memref<1x128xf32, #tpu.memory_space<vmem>>, vector<1x128xf32>
    %5 = vector.broadcast %4 : vector<1x128xf32> to vector<8x128xf32>
    %6 = arith.addf %3, %5 : vector<8x128xf32>
    %cst_5 = arith.constant 0.000000e+00 : f32
    %7 = vector.broadcast %cst_5 : f32 to vector<8x128xf32>
    %8 = arith.maximumf %6, %7 : vector<8x128xf32>
    %9 = arith.truncf %8 : vector<8x128xf32> to vector<8x128xbf16>
    %c0_6 = arith.constant 0 : index
    %c0_7 = arith.constant 0 : index
    %10 = vector.load %arg4[%c0_6, %c0_7] : memref<128x128xbf16, #tpu.memory_space<vmem>>, vector<128x128xbf16>
    %cst_8 = arith.constant dense<0.000000e+00> : vector<8x128xf32>
    %11 = tpu.matmul %9, %10, %cst_8 {dimension_numbers = #tpu.dot_dimension_numbers<[1], [0], [0], [1], [0, 0, 1, 1], [], []>} : vector<8x128xbf16>, vector<128x128xbf16>, vector<8x128xf32> -> vector<8x128xf32>
    %c0_9 = arith.constant 0 : index
    %c0_10 = arith.constant 0 : index
    %12 = vector.load %arg5[%c0_9, %c0_10] : memref<1x128xf32, #tpu.memory_space<vmem>>, vector<1x128xf32>
    %13 = vector.broadcast %12 : vector<1x128xf32> to vector<8x128xf32>
    %14 = arith.addf %11, %13 : vector<8x128xf32>
    %cst_11 = arith.constant 0.000000e+00 : f32
    %15 = vector.broadcast %cst_11 : f32 to vector<8x128xf32>
    %16 = arith.maximumf %14, %15 : vector<8x128xf32>
    %17 = arith.truncf %16 : vector<8x128xf32> to vector<8x128xbf16>
    %c0_12 = arith.constant 0 : index
    %c0_13 = arith.constant 0 : index
    %18 = vector.load %arg6[%c0_12, %c0_13] : memref<128x128xbf16, #tpu.memory_space<vmem>>, vector<128x128xbf16>
    %cst_14 = arith.constant dense<0.000000e+00> : vector<8x128xf32>
    %19 = tpu.matmul %17, %18, %cst_14 {dimension_numbers = #tpu.dot_dimension_numbers<[1], [0], [0], [1], [0, 0, 1, 1], [], []>} : vector<8x128xbf16>, vector<128x128xbf16>, vector<8x128xf32> -> vector<8x128xf32>
    %20 = vector.extract_strided_slice %19 {offsets = [0, 0], sizes = [8, 4], strides = [1, 1]} : vector<8x128xf32> to vector<8x4xf32>
    %c0_15 = arith.constant 0 : index
    %c0_16 = arith.constant 0 : index
    %21 = vector.load %arg7[%c0_15, %c0_16] : memref<1x4xf32, #tpu.memory_space<vmem>>, vector<1x4xf32>
    %22 = vector.broadcast %21 : vector<1x4xf32> to vector<8x4xf32>
    %23 = arith.addf %20, %22 : vector<8x4xf32>
    %c0_17 = arith.constant 0 : index
    %c0_18 = arith.constant 0 : index
    %24 = vector.load %arg8[%c0_17, %c0_18] : memref<8x4xf32, #tpu.memory_space<vmem>>, vector<8x4xf32>
    tpu.vector_store %arg8[%c0_17, %c0_18], %23 {strides = array<i32>} : memref<8x4xf32, #tpu.memory_space<vmem>>, vector<8x4xf32>,
    return
  }
  func.func @transform_0(%arg0: i32) -> (i32, i32) {
    %c0_i32 = arith.constant 0 : i32
    %c0_i32_0 = arith.constant 0 : i32
    return %arg0, %c0_i32 : i32, i32
  }
  func.func @transform_1(%arg0: i32) -> (i32, i32) {
    %c0_i32 = arith.constant 0 : i32
    %c0_i32_0 = arith.constant 0 : i32
    %c0_i32_1 = arith.constant 0 : i32
    return %c0_i32, %c0_i32_0 : i32, i32
  }
  func.func @transform_2(%arg0: i32) -> (i32, i32) {
    %c0_i32 = arith.constant 0 : i32
    %c0_i32_0 = arith.constant 0 : i32
    %c0_i32_1 = arith.constant 0 : i32
    return %c0_i32, %c0_i32_0 : i32, i32
  }
  func.func @transform_3(%arg0: i32) -> (i32, i32) {
    %c0_i32 = arith.constant 0 : i32
    %c0_i32_0 = arith.constant 0 : i32
    %c0_i32_1 = arith.constant 0 : i32
    return %c0_i32, %c0_i32_0 : i32, i32
  }
  func.func @transform_4(%arg0: i32) -> (i32, i32) {
    %c0_i32 = arith.constant 0 : i32
    %c0_i32_0 = arith.constant 0 : i32
    %c0_i32_1 = arith.constant 0 : i32
    return %c0_i32, %c0_i32_0 : i32, i32
  }
  func.func @transform_5(%arg0: i32) -> (i32, i32) {
    %c0_i32 = arith.constant 0 : i32
    %c0_i32_0 = arith.constant 0 : i32
    %c0_i32_1 = arith.constant 0 : i32
    return %c0_i32, %c0_i32_0 : i32, i32
  }
  func.func @transform_6(%arg0: i32) -> (i32, i32) {
    %c0_i32 = arith.constant 0 : i32
    %c0_i32_0 = arith.constant 0 : i32
    %c0_i32_1 = arith.constant 0 : i32
    return %c0_i32, %c0_i32_0 : i32, i32
  }
  func.func @transform_7(%arg0: i32) -> (i32, i32) {
    %c0_i32 = arith.constant 0 : i32
    %c0_i32_0 = arith.constant 0 : i32
    return %arg0, %c0_i32 : i32, i32
  }
}

</mosaic_0001>

<llo_original>
// kernel: dqn_forward.1
$region0: #{dqn_forward.1}
  #allocation0 [shape = 'u32[]', space=smem, size = 0x4, offset = 0x4, fixed_abs, tag = 'smem constant byte address 0x4 - core index']
  #allocation1 [shape = 'u32[144,128]{1,0:T(1,128)}', space=vmem, size = 0x12000, scoped, tag = 'internal scratch']
  %s0 = inlined_call_operand.hbm [shape: f32[8,16], index: 0, kind: input, shape index: {}]
  %s1 = inlined_call_operand.hbm [shape: bf16[16,128], index: 1, kind: input, shape index: {}]
  %s2 = inlined_call_operand.vmem [shape: f32[1,128], index: 2, kind: input, shape index: {}]
  %s3 = inlined_call_operand.hbm [shape: bf16[128,128], index: 3, kind: input, shape index: {}]
  %s4 = inlined_call_operand.vmem [shape: f32[1,128], index: 4, kind: input, shape index: {}]
  %s5 = inlined_call_operand.hbm [shape: bf16[128,128], index: 5, kind: input, shape index: {}]
  %s6 = inlined_call_operand.vmem [shape: f32[1,4], index: 6, kind: input, shape index: {}]
  %s7 = inlined_call_operand.vmem [shape: f32[8,4], index: 7, kind: output, shape index: {}]
  %s8 = sld [smem:[#allocation0]]
  $region54: #{dqn_forward.1} parent=0
    _
  %s10 = ssub.s32 1, %s8
  %s11 = scalar_select 0, %s10, %s8
  $region1: #{dqn_forward.1} parent=0
    #allocation2 [shape = 'u8[4096]{0}', space=vmem, size = 0x1000, scoped, tag = 'input window, operand 0, single buffered']
    #allocation3 [shape = 's32[1]{0}', space=sflag, size = 0x4, scoped, tag = 'scoped memory for dqn_forward.1']
    #allocation4 [shape = 'u8[4096]{0}', space=vmem, size = 0x1000, scoped, tag = 'input window, operand 1, single buffered']
    #allocation5 [shape = 's32[1]{0}', space=sflag, size = 0x4, scoped, tag = 'scoped memory for dqn_forward.1']
    #allocation6 [shape = 'u8[32768]{0}', space=vmem, size = 0x8000, scoped, tag = 'input window, operand 3, single buffered']
    #allocation7 [shape = 'u8[32768]{0}', space=vmem, size = 0x8000, scoped, tag = 'input window, operand 5, single buffered']
    #allocation8 [shape = 's32[1]{0}', space=sflag, size = 0x4, scoped, tag = 'scoped memory for dqn_forward.1']
    %12 = vsyncpa [#allocation3], 0
    %13 = vsyncpa [#allocation5], 0
    %14 = vsyncpa [#allocation8], 0
    // Predicated region
    $region2: #{dqn_forward.1} parent=1 // pred_check
      _
    $region3: #{dqn_forward.1} parent=1 // pred_check_branch
      %16 = sbr.rel (0) target = $region5
    $region4: #{dqn_forward.1} parent=1 // pred_region
      %s18 = ssub.s32 128, 128
      %19 = vsyncadd [#allocation3], %s18
      %s21 = sshll.u32 [#allocation2], 4
      %s22 = int_to_ptr.vmem [resolvable:$true] %s21
      %24 = dma.hbm_to_vmem [thread:$0]  %s0, 128, %s22, [#allocation3]
    $region5: #{dqn_forward.1} parent=1 // pred_fallthru
      _
    // Predicated region
    $region6: #{dqn_forward.1} parent=1 // pred_check
      _
    $region7: #{dqn_forward.1} parent=1 // pred_check_branch
      %26 = sbr.rel (0) target = $region9
    $region8: #{dqn_forward.1} parent=1 // pred_region
      %s28 = ssub.s32 128, 128
      %29 = vsyncadd [#allocation5], %s28
      %s30 = sshll.u32 [#allocation4], 4
      %s31 = int_to_ptr.vmem [resolvable:$true] %s30
      %36 = dma.hbm_to_vmem [thread:$0]  %s1, 128, %s31, [#allocation5], 64, 64, 4
    $region9: #{dqn_forward.1} parent=1 // pred_fallthru
      _
    // Predicated region
    $region10: #{dqn_forward.1} parent=1 // pred_check
      _
    $region11: #{dqn_forward.1} parent=1 // pred_check_branch
      %38 = sbr.rel (0) target = $region13
    $region12: #{dqn_forward.1} parent=1 // pred_region
      _
    $region13: #{dqn_forward.1} parent=1 // pred_fallthru
      _
    // Predicated region
    $region14: #{dqn_forward.1} parent=1 // pred_check
      _
    $region15: #{dqn_forward.1} parent=1 // pred_check_branch
      %40 = sbr.rel (0) target = $region17
    $region16: #{dqn_forward.1} parent=1 // pred_region
      %s42 = ssub.s32 1024, 1024
      %43 = vsyncadd [#allocation5], %s42
      %s44 = sshll.u32 [#allocation6], 4
      %s45 = int_to_ptr.vmem [resolvable:$true] %s44
      %50 = dma.hbm_to_vmem [thread:$0]  %s3, 1024, %s45, [#allocation5], 64, 64, 4
    $region17: #{dqn_forward.1} parent=1 // pred_fallthru
      _
    // Predicated region
    $region18: #{dqn_forward.1} parent=1 // pred_check
      _
    $region19: #{dqn_forward.1} parent=1 // pred_check_branch
      %52 = sbr.rel (0) target = $region21
    $region20: #{dqn_forward.1} parent=1 // pred_region
      _
    $region21: #{dqn_forward.1} parent=1 // pred_fallthru
      _
    // Predicated region
    $region22: #{dqn_forward.1} parent=1 // pred_check
      _
    $region23: #{dqn_forward.1} parent=1 // pred_check_branch
      %54 = sbr.rel (0) target = $region25
    $region24: #{dqn_forward.1} parent=1 // pred_region
      %s56 = ssub.s32 1024, 1024
      %57 = vsyncadd [#allocation8], %s56
      %s58 = sshll.u32 [#allocation7], 4
      %s59 = int_to_ptr.vmem [resolvable:$true] %s58
      %64 = dma.hbm_to_vmem [thread:$0]  %s5, 1024, %s59, [#allocation8], 64, 64, 4
    $region25: #{dqn_forward.1} parent=1 // pred_fallthru
      _
    // Predicated region
    $region26: #{dqn_forward.1} parent=1 // pred_check
      _
    $region27: #{dqn_forward.1} parent=1 // pred_check_branch
      %66 = sbr.rel (0) target = $region29
    $region28: #{dqn_forward.1} parent=1 // pred_region
      _
    $region29: #{dqn_forward.1} parent=1 // pred_fallthru
      _
    // Predicated region
    $region30: #{dqn_forward.1} parent=1 // pred_check
      _
    $region31: #{dqn_forward.1} parent=1 // pred_check_branch
      %68 = sbr.rel (0) target = $region33
    $region32: #{dqn_forward.1} parent=1 // pred_region
      %69 = dma.done [#allocation3], 128
    $region33: #{dqn_forward.1} parent=1 // pred_fallthru
      _
    // Predicated region
    $region34: #{dqn_forward.1} parent=1 // pred_check
      _
    $region35: #{dqn_forward.1} parent=1 // pred_check_branch
      %71 = sbr.rel (0) target = $region37
    $region36: #{dqn_forward.1} parent=1 // pred_region
      %72 = dma.done [#allocation5], 128
    $region37: #{dqn_forward.1} parent=1 // pred_fallthru
      _
    // Predicated region
    $region38: #{dqn_forward.1} parent=1 // pred_check
      _
    $region39: #{dqn_forward.1} parent=1 // pred_check_branch
      %74 = sbr.rel (0) target = $region41
    $region40: #{dqn_forward.1} parent=1 // pred_region
      %75 = dma.done [#allocation5], 1024
    $region41: #{dqn_forward.1} parent=1 // pred_fallthru
      _
    // Predicated region
    $region42: #{dqn_forward.1} parent=1 // pred_check
      _
    $region43: #{dqn_forward.1} parent=1 // pred_check_branch
      %77 = sbr.rel (0) target = $region45
    $region44: #{dqn_forward.1} parent=1 // pred_region
      %78 = dma.done [#allocation8], 1024
    $region45: #{dqn_forward.1} parent=1 // pred_fallthru
      _
    %v80 = vld [vmem:[#allocation2] sm:$0xff]
    %v81 = vpack.c.bf16 %v80, %v80
    %v82 = vld [vmem:[#allocation4] sm:$0xf]
    %v83 = vld [vmem:[#allocation4 + $0x4] sm:$0xf]
    %v84 = vld [vmem:[%s2] sm:$0x1]
    %v86 = vlaneseq
    %v87 = vshrl.u32 %v86, 7
    %v88 = vsub.s32 0, %v87
    %v89 = vrot.slane %v84, %v88
    %v93 = vunpack.c.l.b16 %v82
    %v94 = vunpack.c.l.b16 %v83
    %v95 = vpack.c.b16 %v94, %v93
    %vm97 = vcmask 130048
    %v99 = vsel %vm97, %v81, 0
    %101 = vmatprep.subr.bf16.mxu0 0
    %102 = vmatpush1.bf16.msra.mxu0 0
    %103 = vmatprep.subr.bf16.mxu0 0
    %104 = vmatpush1.bf16.msra.mxu0 0
    %105 = vmatprep.subr.bf16.mxu0 0
    %106 = vmatpush1.bf16.msra.mxu0 0
    %107 = vmatprep.subr.bf16.mxu0 0
    %108 = vmatpush1.bf16.msra.mxu0 0
    %109 = vmatprep.subr.bf16.mxu0 0
    %110 = vmatpush1.bf16.msra.mxu0 0
    %111 = vmatprep.subr.bf16.mxu0 0
    %112 = vmatpush1.bf16.msra.mxu0 0
    %113 = vmatprep.subr.bf16.mxu0 0
    %114 = vmatpush1.bf16.msra.mxu0 0
    %115 = vmatprep.subr.bf16.mxu0 0
    %116 = vmatpush1.bf16.msra.mxu0 %v95
    %117 = vmatprep.subr.bf16.mxu0 0
    %118 = vmatpush2.bf16.msra.mxu0 0
    %119 = vmatprep.subr.bf16.mxu0 0
    %120 = vmatpush2.bf16.msra.mxu0 0
    %121 = vmatprep.subr.bf16.mxu0 0
    %122 = vmatpush2.bf16.msra.mxu0 0
    %123 = vmatprep.subr.bf16.mxu0 0
    %124 = vmatpush2.bf16.msra.mxu0 0
    %125 = vmatprep.subr.bf16.mxu0 0
    %126 = vmatpush2.bf16.msra.mxu0 0
    %127 = vmatprep.subr.bf16.mxu0 0
    %128 = vmatpush2.bf16.msra.mxu0 0
    %129 = vmatprep.subr.bf16.mxu0 0
    %130 = vmatpush2.bf16.msra.mxu0 0
    %131 = vmatprep.subr.bf16.mxu0 0
    %132 = vmatpush2.bf16.msra.mxu0 0
    %133 = vmatprep.mubr.bf16.mxu0 0
    %134 = vmatmul.mubr.bf16.gmra.mxu0 %v99
    %v135 = vpop.f32.mrf.mxu0
    %v136 = vadd.f32 %v89, %v135
    %v137 = vpop.f32.mrf.mxu0
    %v138 = vpop.f32.mrf.mxu0
    %v139 = vpop.f32.mrf.mxu0
    %140 = vdwg.mxu0
    %v141 = vmax.f32 %v136, 0.0
    %v142 = vpack.c.bf16 %v141, %v141
    %v143 = vld [vmem:[#allocation6] sm:$0xf]
    %v144 = vld [vmem:[#allocation6 + $0x4] sm:$0xf]
    %v145 = vld [vmem:[#allocation6 + $0x8] sm:$0xf]
    %v146 = vld [vmem:[#allocation6 + $0xc] sm:$0xf]
    %v147 = vld [vmem:[#allocation6 + $0x10] sm:$0xf]
    %v148 = vld [vmem:[#allocation6 + $0x14] sm:$0xf]
    %v149 = vld [vmem:[#allocation6 + $0x18] sm:$0xf]
    %v150 = vld [vmem:[#allocation6 + $0x1c] sm:$0xf]
    %v151 = vld [vmem:[#allocation6 + $0x20] sm:$0xf]
    %v152 = vld [vmem:[#allocation6 + $0x24] sm:$0xf]
    %v153 = vld [vmem:[#allocation6 + $0x28] sm:$0xf]
    %v154 = vld [vmem:[#allocation6 + $0x2c] sm:$0xf]
    %v155 = vld [vmem:[#allocation6 + $0x30] sm:$0xf]
    %v156 = vld [vmem:[#allocation6 + $0x34] sm:$0xf]
    %v157 = vld [vmem:[#allocation6 + $0x38] sm:$0xf]
    %v158 = vld [vmem:[#allocation6 + $0x3c] sm:$0xf]
    %v159 = vld [vmem:[%s4] sm:$0x1]
    %v161 = vlaneseq
    %v162 = vshrl.u32 %v161, 7
    %v163 = vsub.s32 0, %v162
    %v164 = vrot.slane %v159, %v163
    %v182 = vunpack.c.l.b16 %v143
    %v183 = vunpack.c.l.b16 %v144
    %v184 = vunpack.c.l.b16 %v145
    %v185 = vunpack.c.l.b16 %v146
    %v186 = vunpack.c.l.b16 %v147
    %v187 = vunpack.c.l.b16 %v148
    %v188 = vunpack.c.l.b16 %v149
    %v189 = vunpack.c.l.b16 %v150
    %v190 = vunpack.c.l.b16 %v151
    %v191 = vunpack.c.l.b16 %v152
    %v192 = vunpack.c.l.b16 %v153
    %v193 = vunpack.c.l.b16 %v154
    %v194 = vunpack.c.l.b16 %v155
    %v195 = vunpack.c.l.b16 %v156
    %v196 = vunpack.c.l.b16 %v157
    %v197 = vunpack.c.l.b16 %v158
    %v198 = vpack.c.b16 %v183, %v182
    %v199 = vpack.c.b16 %v185, %v184
    %v200 = vpack.c.b16 %v187, %v186
    %v201 = vpack.c.b16 %v189, %v188
    %v202 = vpack.c.b16 %v191, %v190
    %v203 = vpack.c.b16 %v193, %v192
    %v204 = vpack.c.b16 %v195, %v194
    %v205 = vpack.c.b16 %v197, %v196
    %214 = vmatprep.subr.bf16.mxu0 0
    %215 = vmatpush1.bf16.msra.mxu0 %v205
    %216 = vmatprep.subr.bf16.mxu0 0
    %217 = vmatpush1.bf16.msra.mxu0 %v204
    %218 = vmatprep.subr.bf16.mxu0 0
    %219 = vmatpush1.bf16.msra.mxu0 %v203
    %220 = vmatprep.subr.bf16.mxu0 0
    %221 = vmatpush1.bf16.msra.mxu0 %v202
    %222 = vmatprep.subr.bf16.mxu0 0
    %223 = vmatpush1.bf16.msra.mxu0 %v201
    %224 = vmatprep.subr.bf16.mxu0 0
    %225 = vmatpush1.bf16.msra.mxu0 %v200
    %226 = vmatprep.subr.bf16.mxu0 0
    %227 = vmatpush1.bf16.msra.mxu0 %v199
    %228 = vmatprep.subr.bf16.mxu0 0
    %229 = vmatpush1.bf16.msra.mxu0 %v198
    %230 = vmatprep.subr.bf16.mxu0 0
    %231 = vmatpush2.bf16.msra.mxu0 0
    %232 = vmatprep.subr.bf16.mxu0 0
    %233 = vmatpush2.bf16.msra.mxu0 0
    %234 = vmatprep.subr.bf16.mxu0 0
    %235 = vmatpush2.bf16.msra.mxu0 0
    %236 = vmatprep.subr.bf16.mxu0 0
    %237 = vmatpush2.bf16.msra.mxu0 0
    %238 = vmatprep.subr.bf16.mxu0 0
    %239 = vmatpush2.bf16.msra.mxu0 0
    %240 = vmatprep.subr.bf16.mxu0 0
    %241 = vmatpush2.bf16.msra.mxu0 0
    %242 = vmatprep.subr.bf16.mxu0 0
    %243 = vmatpush2.bf16.msra.mxu0 0
    %244 = vmatprep.subr.bf16.mxu0 0
    %245 = vmatpush2.bf16.msra.mxu0 0
    %246 = vmatprep.mubr.bf16.mxu0 0
    %247 = vmatmul.mubr.bf16.gmra.mxu0 %v142
    %v248 = vpop.f32.mrf.mxu0
    %v249 = vadd.f32 %v164, %v248
    %v250 = vpop.f32.mrf.mxu0
    %v251 = vpop.f32.mrf.mxu0
    %v252 = vpop.f32.mrf.mxu0
    %253 = vdwg.mxu0
    %v254 = vmax.f32 %v249, 0.0
    %v255 = vpack.c.bf16 %v254, %v254
    %v256 = vld [vmem:[#allocation7] sm:$0xf]
    %v257 = vld [vmem:[#allocation7 + $0x4] sm:$0xf]
    %v258 = vld [vmem:[#allocation7 + $0x8] sm:$0xf]
    %v259 = vld [vmem:[#allocation7 + $0xc] sm:$0xf]
    %v260 = vld [vmem:[#allocation7 + $0x10] sm:$0xf]
    %v261 = vld [vmem:[#allocation7 + $0x14] sm:$0xf]
    %v262 = vld [vmem:[#allocation7 + $0x18] sm:$0xf]
    %v263 = vld [vmem:[#allocation7 + $0x1c] sm:$0xf]
    %v264 = vld [vmem:[#allocation7 + $0x20] sm:$0xf]
    %v265 = vld [vmem:[#allocation7 + $0x24] sm:$0xf]
    %v266 = vld [vmem:[#allocation7 + $0x28] sm:$0xf]
    %v267 = vld [vmem:[#allocation7 + $0x2c] sm:$0xf]
    %v268 = vld [vmem:[#allocation7 + $0x30] sm:$0xf]
    %v269 = vld [vmem:[#allocation7 + $0x34] sm:$0xf]
    %v270 = vld [vmem:[#allocation7 + $0x38] sm:$0xf]
    %v271 = vld [vmem:[#allocation7 + $0x3c] sm:$0xf]
    %v288 = vunpack.c.l.b16 %v256
    %v289 = vunpack.c.l.b16 %v257
    %v290 = vunpack.c.l.b16 %v258
    %v291 = vunpack.c.l.b16 %v259
    %v292 = vunpack.c.l.b16 %v260
    %v293 = vunpack.c.l.b16 %v261
    %v294 = vunpack.c.l.b16 %v262
    %v295 = vunpack.c.l.b16 %v263
    %v296 = vunpack.c.l.b16 %v264
    %v297 = vunpack.c.l.b16 %v265
    %v298 = vunpack.c.l.b16 %v266
    %v299 = vunpack.c.l.b16 %v267
    %v300 = vunpack.c.l.b16 %v268
    %v301 = vunpack.c.l.b16 %v269
    %v302 = vunpack.c.l.b16 %v270
    %v303 = vunpack.c.l.b16 %v271
    %v304 = vpack.c.b16 %v289, %v288
    %v305 = vpack.c.b16 %v291, %v290
    %v306 = vpack.c.b16 %v293, %v292
    %v307 = vpack.c.b16 %v295, %v294
    %v308 = vpack.c.b16 %v297, %v296
    %v309 = vpack.c.b16 %v299, %v298
    %v310 = vpack.c.b16 %v301, %v300
    %v311 = vpack.c.b16 %v303, %v302
    %320 = vmatprep.subr.bf16.mxu0 0
    %321 = vmatpush1.bf16.msra.mxu0 %v311
    %322 = vmatprep.subr.bf16.mxu0 0
    %323 = vmatpush1.bf16.msra.mxu0 %v310
    %324 = vmatprep.subr.bf16.mxu0 0
    %325 = vmatpush1.bf16.msra.mxu0 %v309
    %326 = vmatprep.subr.bf16.mxu0 0
    %327 = vmatpush1.bf16.msra.mxu0 %v308
    %328 = vmatprep.subr.bf16.mxu0 0
    %329 = vmatpush1.bf16.msra.mxu0 %v307
    %330 = vmatprep.subr.bf16.mxu0 0
    %331 = vmatpush1.bf16.msra.mxu0 %v306
    %332 = vmatprep.subr.bf16.mxu0 0
    %333 = vmatpush1.bf16.msra.mxu0 %v305
    %334 = vmatprep.subr.bf16.mxu0 0
    %335 = vmatpush1.bf16.msra.mxu0 %v304
    %336 = vmatprep.subr.bf16.mxu0 0
    %337 = vmatpush2.bf16.msra.mxu0 0
    %338 = vmatprep.subr.bf16.mxu0 0
    %339 = vmatpush2.bf16.msra.mxu0 0
    %340 = vmatprep.subr.bf16.mxu0 0
    %341 = vmatpush2.bf16.msra.mxu0 0
    %342 = vmatprep.subr.bf16.mxu0 0
    %343 = vmatpush2.bf16.msra.mxu0 0
    %344 = vmatprep.subr.bf16.mxu0 0
    %345 = vmatpush2.bf16.msra.mxu0 0
    %346 = vmatprep.subr.bf16.mxu0 0
    %347 = vmatpush2.bf16.msra.mxu0 0
    %348 = vmatprep.subr.bf16.mxu0 0
    %349 = vmatpush2.bf16.msra.mxu0 0
    %350 = vmatprep.subr.bf16.mxu0 0
    %351 = vmatpush2.bf16.msra.mxu0 0
    %352 = vmatprep.mubr.bf16.mxu0 0
    %353 = vmatmul.mubr.bf16.gmra.mxu0 %v255
    %v354 = vpop.f32.mrf.mxu0
    %v355 = vadd.f32 0.0, %v354
    %v356 = vpop.f32.mrf.mxu0
    %v357 = vpop.f32.mrf.mxu0
    %v358 = vpop.f32.mrf.mxu0
    %359 = vdwg.mxu0
    %v360 = vld [vmem:[%s6] sm:$0x1]
    %v362 = vlaneseq
    %v363 = vshrl.u32 %v362, 7
    %v364 = vsub.s32 0, %v363
    %v365 = vrot.slane %v360, %v364
    %v367 = vadd.f32 %v355, %v365
    %vm368 = vcmask 31744
    %369 = vst.msk [vmem:[%s7] sm:$0xff] %vm368, %v367
    // Predicated region
    $region46: #{dqn_forward.1} parent=1 // pred_check
      _
    $region47: #{dqn_forward.1} parent=1 // pred_check_branch
      %371 = sbr.rel (0) target = $region49
    $region48: #{dqn_forward.1} parent=1 // pred_region
      _
    $region49: #{dqn_forward.1} parent=1 // pred_fallthru
      _
    // Predicated region
    $region50: #{dqn_forward.1} parent=1 // pred_check
      _
    $region51: #{dqn_forward.1} parent=1 // pred_check_branch
      %373 = sbr.rel (0) target = $region53
    $region52: #{dqn_forward.1} parent=1 // pred_region
      _
    $region53: #{dqn_forward.1} parent=1 // pred_fallthru
      _
    %374 = vsyncpa [#allocation3], 1
    %375 = vsyncpa [#allocation5], 1
    %376 = vsyncpa [#allocation8], 1

</llo_original>
